<compile_context>
chip_gen: v7x
topology: tpu7x:2x2x1
jax: 0.10.0
libtpu: 0.0.40
codegen_flags: <defaults>
</compile_context>

<pallas_src>
import functools

import jax
import jax.numpy as jnp
from jax.experimental import pallas as pl
from jax.experimental.pallas import tpu as pltpu


def _mlp_kernel(x_ref, w1_ref, b1_ref, w2_ref, b2_ref,
                w3_ref, b3_ref, w4_ref, b4_ref, o_ref, *, bf16_tanh):
    x = x_ref[...]                                        # (tm, 3)  f32
    w1 = w1_ref[...]                                      # (3, 64)  f32

    # Layer 1 (K=3): VPU broadcast-FMAs -- skips a wasteful MXU fill/drain.
    z1 = (x[:, 0:1] * w1[0:1, :]
          + x[:, 1:2] * w1[1:2, :]
          + x[:, 2:3] * w1[2:3, :]
          + b1_ref[...])                                  # (tm, 64)

    def act(v):
        # bf16 tanh rides the bf16 EUP path (v6e/v7x) and packs 2 elem/lane;
        # keep f32 on v5e or when full PINN precision is required.
        if bf16_tanh:
            return jnp.tanh(v.astype(jnp.bfloat16))
        return jnp.tanh(v)

    # Matmul operand dtype follows the weight dtype chosen in the wrapper:
    # bf16 weights => true bf16 x bf16 MXU matmuls with f32 accumulation.
    mm_dtype = w2_ref.dtype

    h = act(z1).astype(mm_dtype)                          # (tm, 64)
    h = act(jnp.dot(h, w2_ref[...], preferred_element_type=jnp.float32)
            + b2_ref[...]).astype(mm_dtype)               # (tm, 256)
    h = act(jnp.dot(h, w3_ref[...], preferred_element_type=jnp.float32)
            + b3_ref[...]).astype(mm_dtype)               # (tm, 64)
    o_ref[...] = (jnp.dot(h, w4_ref[...], preferred_element_type=jnp.float32)
                  + b4_ref[...]).astype(o_ref.dtype)      # (tm, 3)


def _round_up(v, m):
    return ((v + m - 1) // m) * m


def pinns_mlp_forward(x, params, *, tm=2048, bf16_matmul=True, bf16_tanh=False):
    """x: [N, 3] float32.  params: dict of (Wi, bi) with Wi [in, out].

    tm: batch tile.  Only needs to be a multiple of 8; default 2048 (sweep
    2048-4096) so the ~0.35 us/step pipeline overhead is amortized.  It is
    clamped so the grid keeps >= 2 steps (v7x has 2 TensorCores).
    bf16_matmul: cast w2/w3/w4 and the activations feeding the dots to bf16
    (f32 accumulate) -- the native MXU fast path on every TPU generation.
    bf16_tanh: compute tanh in bf16 (v6e/v7x bf16 EUP); keep False on v5e or
    when full f32 PINN accuracy is required.
    """
    n, d_in = x.shape
    assert d_in == 3

    # Tile clamp: multiple of 8 (sublane rule), never larger than the batch,
    # and small enough that the grid has >= 2 parallel steps (v7x dual-TC).
    tm = max(8, _round_up(int(tm), 8))
    tm = min(tm, _round_up(n, 8))
    tm = min(tm, max(8, _round_up(pl.cdiv(n, 2), 8)))
    grid = pl.cdiv(n, tm)   # ragged last tile handled by Pallas masking

    mm_dtype = jnp.bfloat16 if bf16_matmul else jnp.float32
    w1, b1 = params["w1"], params["b1"].reshape(1, -1)                 # f32
    w2, b2 = params["w2"].astype(mm_dtype), params["b2"].reshape(1, -1)
    w3, b3 = params["w3"].astype(mm_dtype), params["b3"].reshape(1, -1)
    w4, b4 = params["w4"].astype(mm_dtype), params["b4"].reshape(1, -1)

    def full(a):  # constant-index full block (fetched once, stays resident)
        return pl.BlockSpec(a.shape, lambda i: (0, 0))

    weight_bytes = sum(
        int(a.size) * jnp.dtype(a.dtype).itemsize
        for a in (w1, b1, w2, b2, w3, b3, w4, b4))

    # Explicit scoped-VMEM budget: (tm,3) x/out blocks pad to 128 lanes and
    # are double-buffered; intermediates are at most (tm,256) f32.  Clamped
    # to [16 MiB, 48 MiB] -- above v5e's 16 MiB default scoped VMEM, below
    # v7x's 64 MiB physical VMEM.
    io_block_bytes = 2 * 2 * tm * 128 * 4            # x + out, double-buffered
    act_bytes = tm * (64 + 256 + 256 + 64) * 4       # f32 upper bound
    vmem_est = io_block_bytes + 2 * weight_bytes + act_bytes
    vmem_limit_bytes = int(min(max(int(1.5 * vmem_est), 16 << 20), 48 << 20))

    # Advisory cost hint for XLA scheduling around the custom call.
    flops = 2 * n * (3 * 64 + 64 * 256 + 256 * 64 + 64 * 3)
    transcendentals = n * (64 + 256 + 64)
    bytes_accessed = n * 3 * 4 * 2 + weight_bytes

    kernel = functools.partial(_mlp_kernel, bf16_tanh=bf16_tanh)

    out = pl.pallas_call(
        kernel,
        out_shape=jax.ShapeDtypeStruct((n, 3), jnp.float32),
        grid_spec=pltpu.PrefetchScalarGridSpec(
            num_scalar_prefetch=0,
            grid=(grid,),
            in_specs=[
                pl.BlockSpec((tm, 3), lambda i: (i, 0)),   # x tile
                full(w1), full(b1),
                full(w2), full(b2),
                full(w3), full(b3),
                full(w4), full(b4),
            ],
            out_specs=pl.BlockSpec((tm, 3), lambda i: (i, 0)),
        ),
        compiler_params=pltpu.CompilerParams(
            dimension_semantics=("parallel",),
            vmem_limit_bytes=vmem_limit_bytes),
        cost_estimate=pl.CostEstimate(
            flops=flops,
            transcendentals=transcendentals,
            bytes_accessed=bytes_accessed),
    )(x, w1, b1, w2, b2, w3, b3, w4, b4)

    return out


def init_params(key):
    """Deterministic init matching nn.Linear shapes (stored transposed)."""
    dims = [(3, 64), (64, 256), (256, 64), (64, 3)]
    params = {}
    for idx, (fan_in, fan_out) in enumerate(dims, start=1):
        key, kw, kb = jax.random.split(key, 3)
        bound = 1.0 / jnp.sqrt(jnp.float32(fan_in))
        params[f"w{idx}"] = jax.random.uniform(
            kw, (fan_in, fan_out), jnp.float32, -bound, bound)
        params[f"b{idx}"] = jax.random.uniform(
            kb, (fan_out,), jnp.float32, -bound, bound)
    return params


def _reference_forward(x, params, *, bf16_matmul=False, bf16_tanh=False):
    """Pure-JAX reference mirroring the kernel's dtype choices exactly."""
    mm_dtype = jnp.bfloat16 if bf16_matmul else jnp.float32

    def act(v):
        if bf16_tanh:
            return jnp.tanh(v.astype(jnp.bfloat16))
        return jnp.tanh(v)

    w1, b1 = params["w1"], params["b1"]
    # Layer 1 in the same exact-f32 FMA form as the kernel (== x @ w1 + b1).
    z1 = (x[:, 0:1] * w1[0:1, :]
          + x[:, 1:2] * w1[1:2, :]
          + x[:, 2:3] * w1[2:3, :] + b1)
    h = act(z1).astype(mm_dtype)
    h = act(jnp.dot(h, params["w2"].astype(mm_dtype),
                    preferred_element_type=jnp.float32)
            + params["b2"]).astype(mm_dtype)
    h = act(jnp.dot(h, params["w3"].astype(mm_dtype),
                    preferred_element_type=jnp.float32)
            + params["b3"]).astype(mm_dtype)
    return (jnp.dot(h, params["w4"].astype(mm_dtype),
                    preferred_element_type=jnp.float32)
            + params["b4"])


if __name__ == "__main__":
    key = jax.random.PRNGKey(0)
    kp, kx1, kx2, kx3 = jax.random.split(key, 4)
    params = init_params(kp)

    # 1) Exact-f32 path, tiny batch (tm clamps to 8, single grid step).
    x_small = jax.random.normal(kx1, (8, 3), dtype=jnp.float32)
    out_small = jax.block_until_ready(
        pinns_mlp_forward(x_small, params, bf16_matmul=False, bf16_tanh=False))
    ref_small = _reference_forward(x_small, params)
    assert out_small.shape == (8, 3)
    assert jnp.allclose(out_small, ref_small, atol=1e-5, rtol=1e-5)

    # 2) Default path (bf16 x bf16 matmuls, f32 tanh), ragged batch:
    #    >=2 grid steps plus a masked partial last tile (no jnp.pad).
    x_ragged = jax.random.normal(kx2, (100, 3), dtype=jnp.float32)
    out_ragged = jax.block_until_ready(
        pinns_mlp_forward(x_ragged, params, tm=64))
    ref_ragged = _reference_forward(x_ragged, params, bf16_matmul=True)
    assert out_ragged.shape == (100, 3)
    assert jnp.allclose(out_ragged, ref_ragged, atol=5e-3, rtol=5e-3)
    # Sanity vs. the exact-f32 math (bf16 operand rounding only).
    ref_f32 = _reference_forward(x_ragged, params)
    assert jnp.allclose(out_ragged, ref_f32, atol=5e-2, rtol=5e-2)

    # 3) Full bf16 fast path (matmuls + tanh) -- the v6e/v7x configuration.
    x_bf16 = jax.random.normal(kx3, (96, 3), dtype=jnp.float32)
    out_bf16 = jax.block_until_ready(
        pinns_mlp_forward(x_bf16, params, tm=64,
                          bf16_matmul=True, bf16_tanh=True))
    ref_bf16 = _reference_forward(x_bf16, params,
                                  bf16_matmul=True, bf16_tanh=True)
    assert out_bf16.shape == (96, 3)
    assert jnp.allclose(out_bf16, ref_bf16, atol=1e-2, rtol=1e-2)

    print("KERNEL_OK")
</pallas_src>

<mosaic_0001>
module attributes {stable_mosaic.version = 11 : i64} {
  func.func @_mlp_kernel(%arg0: i32, %arg1: memref<8x3xf32, #tpu.memory_space<vmem>>, %arg2: memref<3x64xf32, #tpu.memory_space<vmem>>, %arg3: memref<1x64xf32, #tpu.memory_space<vmem>>, %arg4: memref<64x256xf32, #tpu.memory_space<vmem>>, %arg5: memref<1x256xf32, #tpu.memory_space<vmem>>, %arg6: memref<256x64xf32, #tpu.memory_space<vmem>>, %arg7: memref<1x64xf32, #tpu.memory_space<vmem>>, %arg8: memref<64x3xf32, #tpu.memory_space<vmem>>, %arg9: memref<1x3xf32, #tpu.memory_space<vmem>>, %arg10: memref<8x3xf32, #tpu.memory_space<vmem>>) attributes {dimension_semantics = [#tpu.dimension_semantics<parallel>], iteration_bounds = array<i64: 1>, scalar_prefetch = 0 : i64, scratch_operands = 0 : i64, tpu.core_type = #tpu.core_type<tc>, window_params = [{transform_indices = @transform_0, window_bounds = array<i64: 8, 3>}, {pipeline_mode = #tpu.pipeline_mode<synchronous>, transform_indices = @transform_1, window_bounds = array<i64: 3, 64>}, {pipeline_mode = #tpu.pipeline_mode<synchronous>, transform_indices = @transform_2, window_bounds = array<i64: 1, 64>}, {pipeline_mode = #tpu.pipeline_mode<synchronous>, transform_indices = @transform_3, window_bounds = array<i64: 64, 256>}, {pipeline_mode = #tpu.pipeline_mode<synchronous>, transform_indices = @transform_4, window_bounds = array<i64: 1, 256>}, {pipeline_mode = #tpu.pipeline_mode<synchronous>, transform_indices = @transform_5, window_bounds = array<i64: 256, 64>}, {pipeline_mode = #tpu.pipeline_mode<synchronous>, transform_indices = @transform_6, window_bounds = array<i64: 1, 64>}, {pipeline_mode = #tpu.pipeline_mode<synchronous>, transform_indices = @transform_7, window_bounds = array<i64: 64, 3>}, {pipeline_mode = #tpu.pipeline_mode<synchronous>, transform_indices = @transform_8, window_bounds = array<i64: 1, 3>}, {transform_indices = @transform_9, window_bounds = array<i64: 8, 3>}]} {
    %c0 = arith.constant 0 : index
    %c0_0 = arith.constant 0 : index
    %0 = vector.load %arg1[%c0, %c0_0] : memref<8x3xf32, #tpu.memory_space<vmem>>, vector<8x3xf32>
    %c0_1 = arith.constant 0 : index
    %c0_2 = arith.constant 0 : index
    %1 = vector.load %arg2[%c0_1, %c0_2] : memref<3x64xf32, #tpu.memory_space<vmem>>, vector<3x64xf32>
    %2 = vector.extract_strided_slice %0 {offsets = [0, 0], sizes = [8, 1], strides = [1, 1]} : vector<8x3xf32> to vector<8x1xf32>
    %3 = vector.extract_strided_slice %1 {offsets = [0, 0], sizes = [1, 64], strides = [1, 1]} : vector<3x64xf32> to vector<1x64xf32>
    %4 = vector.broadcast %2 : vector<8x1xf32> to vector<8x64xf32>
    %5 = vector.broadcast %3 : vector<1x64xf32> to vector<8x64xf32>
    %6 = arith.mulf %4, %5 : vector<8x64xf32>
    %7 = vector.extract_strided_slice %0 {offsets = [0, 1], sizes = [8, 1], strides = [1, 1]} : vector<8x3xf32> to vector<8x1xf32>
    %8 = vector.extract_strided_slice %1 {offsets = [1, 0], sizes = [1, 64], strides = [1, 1]} : vector<3x64xf32> to vector<1x64xf32>
    %9 = vector.broadcast %7 : vector<8x1xf32> to vector<8x64xf32>
    %10 = vector.broadcast %8 : vector<1x64xf32> to vector<8x64xf32>
    %11 = arith.mulf %9, %10 : vector<8x64xf32>
    %12 = arith.addf %6, %11 : vector<8x64xf32>
    %13 = vector.extract_strided_slice %0 {offsets = [0, 2], sizes = [8, 1], strides = [1, 1]} : vector<8x3xf32> to vector<8x1xf32>
    %14 = vector.extract_strided_slice %1 {offsets = [2, 0], sizes = [1, 64], strides = [1, 1]} : vector<3x64xf32> to vector<1x64xf32>
    %15 = vector.broadcast %13 : vector<8x1xf32> to vector<8x64xf32>
    %16 = vector.broadcast %14 : vector<1x64xf32> to vector<8x64xf32>
    %17 = arith.mulf %15, %16 : vector<8x64xf32>
    %18 = arith.addf %12, %17 : vector<8x64xf32>
    %c0_3 = arith.constant 0 : index
    %c0_4 = arith.constant 0 : index
    %19 = vector.load %arg3[%c0_3, %c0_4] : memref<1x64xf32, #tpu.memory_space<vmem>>, vector<1x64xf32>
    %20 = vector.broadcast %19 : vector<1x64xf32> to vector<8x64xf32>
    %21 = arith.addf %18, %20 : vector<8x64xf32>
    %22 = math.tanh %21 : vector<8x64xf32>
    %c0_5 = arith.constant 0 : index
    %c0_6 = arith.constant 0 : index
    %23 = vector.load %arg4[%c0_5, %c0_6] : memref<64x256xf32, #tpu.memory_space<vmem>>, vector<64x256xf32>
    %cst = arith.constant dense<0.000000e+00> : vector<8x256xf32>
    %24 = tpu.matmul %22, %23, %cst {dimension_numbers = #tpu.dot_dimension_numbers<[1], [0], [0], [1], [0, 0, 1, 1], [], []>} : vector<8x64xf32>, vector<64x256xf32>, vector<8x256xf32> -> vector<8x256xf32>
    %c0_7 = arith.constant 0 : index
    %c0_8 = arith.constant 0 : index
    %25 = vector.load %arg5[%c0_7, %c0_8] : memref<1x256xf32, #tpu.memory_space<vmem>>, vector<1x256xf32>
    %26 = vector.broadcast %25 : vector<1x256xf32> to vector<8x256xf32>
    %27 = arith.addf %24, %26 : vector<8x256xf32>
    %28 = math.tanh %27 : vector<8x256xf32>
    %c0_9 = arith.constant 0 : index
    %c0_10 = arith.constant 0 : index
    %29 = vector.load %arg6[%c0_9, %c0_10] : memref<256x64xf32, #tpu.memory_space<vmem>>, vector<256x64xf32>
    %cst_11 = arith.constant dense<0.000000e+00> : vector<8x64xf32>
    %30 = tpu.matmul %28, %29, %cst_11 {dimension_numbers = #tpu.dot_dimension_numbers<[1], [0], [0], [1], [0, 0, 1, 1], [], []>} : vector<8x256xf32>, vector<256x64xf32>, vector<8x64xf32> -> vector<8x64xf32>
    %c0_12 = arith.constant 0 : index
    %c0_13 = arith.constant 0 : index
    %31 = vector.load %arg7[%c0_12, %c0_13] : memref<1x64xf32, #tpu.memory_space<vmem>>, vector<1x64xf32>
    %32 = vector.broadcast %31 : vector<1x64xf32> to vector<8x64xf32>
    %33 = arith.addf %30, %32 : vector<8x64xf32>
    %34 = math.tanh %33 : vector<8x64xf32>
    %c0_14 = arith.constant 0 : index
    %c0_15 = arith.constant 0 : index
    %35 = vector.load %arg8[%c0_14, %c0_15] : memref<64x3xf32, #tpu.memory_space<vmem>>, vector<64x3xf32>
    %cst_16 = arith.constant dense<0.000000e+00> : vector<8x3xf32>
    %36 = tpu.matmul %34, %35, %cst_16 {dimension_numbers = #tpu.dot_dimension_numbers<[1], [0], [0], [1], [0, 0, 1, 1], [], []>} : vector<8x64xf32>, vector<64x3xf32>, vector<8x3xf32> -> vector<8x3xf32>
    %c0_17 = arith.constant 0 : index
    %c0_18 = arith.constant 0 : index
    %37 = vector.load %arg9[%c0_17, %c0_18] : memref<1x3xf32, #tpu.memory_space<vmem>>, vector<1x3xf32>
    %38 = vector.broadcast %37 : vector<1x3xf32> to vector<8x3xf32>
    %39 = arith.addf %36, %38 : vector<8x3xf32>
    %c0_19 = arith.constant 0 : index
    %c0_20 = arith.constant 0 : index
    %40 = vector.load %arg10[%c0_19, %c0_20] : memref<8x3xf32, #tpu.memory_space<vmem>>, vector<8x3xf32>
    tpu.vector_store %arg10[%c0_19, %c0_20], %39 {strides = array<i32>} : memref<8x3xf32, #tpu.memory_space<vmem>>, vector<8x3xf32>,
    return
  }
  func.func @transform_0(%arg0: i32) -> (i32, i32) {
    %c0_i32 = arith.constant 0 : i32
    %c0_i32_0 = arith.constant 0 : i32
    return %arg0, %c0_i32 : i32, i32
  }
  func.func @transform_1(%arg0: i32) -> (i32, i32) {
    %c0_i32 = arith.constant 0 : i32
    %c0_i32_0 = arith.constant 0 : i32
    %c0_i32_1 = arith.constant 0 : i32
    return %c0_i32, %c0_i32_0 : i32, i32
  }
  func.func @transform_2(%arg0: i32) -> (i32, i32) {
    %c0_i32 = arith.constant 0 : i32
    %c0_i32_0 = arith.constant 0 : i32
    %c0_i32_1 = arith.constant 0 : i32
    return %c0_i32, %c0_i32_0 : i32, i32
  }
  func.func @transform_3(%arg0: i32) -> (i32, i32) {
    %c0_i32 = arith.constant 0 : i32
    %c0_i32_0 = arith.constant 0 : i32
    %c0_i32_1 = arith.constant 0 : i32
    return %c0_i32, %c0_i32_0 : i32, i32
  }
  func.func @transform_4(%arg0: i32) -> (i32, i32) {
    %c0_i32 = arith.constant 0 : i32
    %c0_i32_0 = arith.constant 0 : i32
    %c0_i32_1 = arith.constant 0 : i32
    return %c0_i32, %c0_i32_0 : i32, i32
  }
  func.func @transform_5(%arg0: i32) -> (i32, i32) {
    %c0_i32 = arith.constant 0 : i32
    %c0_i32_0 = arith.constant 0 : i32
    %c0_i32_1 = arith.constant 0 : i32
    return %c0_i32, %c0_i32_0 : i32, i32
  }
  func.func @transform_6(%arg0: i32) -> (i32, i32) {
    %c0_i32 = arith.constant 0 : i32
    %c0_i32_0 = arith.constant 0 : i32
    %c0_i32_1 = arith.constant 0 : i32
    return %c0_i32, %c0_i32_0 : i32, i32
  }
  func.func @transform_7(%arg0: i32) -> (i32, i32) {
    %c0_i32 = arith.constant 0 : i32
    %c0_i32_0 = arith.constant 0 : i32
    %c0_i32_1 = arith.constant 0 : i32
    return %c0_i32, %c0_i32_0 : i32, i32
  }
  func.func @transform_8(%arg0: i32) -> (i32, i32) {
    %c0_i32 = arith.constant 0 : i32
    %c0_i32_0 = arith.constant 0 : i32
    %c0_i32_1 = arith.constant 0 : i32
    return %c0_i32, %c0_i32_0 : i32, i32
  }
  func.func @transform_9(%arg0: i32) -> (i32, i32) {
    %c0_i32 = arith.constant 0 : i32
    %c0_i32_0 = arith.constant 0 : i32
    return %arg0, %c0_i32 : i32, i32
  }
}

</mosaic_0001>

<llo_original>
// kernel: tpu_custom_call.1
$region0: #{tpu_custom_call.1}
  #allocation0 [shape = 'u32[]', space=smem, size = 0x4, offset = 0x4, fixed_abs, tag = 'smem constant byte address 0x4 - core index']
  #allocation1 [shape = 'u32[144,128]{1,0:T(1,128)}', space=vmem, size = 0x12000, scoped, tag = 'internal scratch']
  %s0 = inlined_call_operand.vmem [shape: f32[8,3], index: 0, kind: input, shape index: {}]
  %s1 = inlined_call_operand.vmem [shape: f32[3,64], index: 1, kind: input, shape index: {}]
  %s2 = inlined_call_operand.vmem [shape: f32[1,64], index: 2, kind: input, shape index: {}]
  %s3 = inlined_call_operand.vmem [shape: f32[64,256], index: 3, kind: input, shape index: {}]
  %s4 = inlined_call_operand.vmem [shape: f32[1,256], index: 4, kind: input, shape index: {}]
  %s5 = inlined_call_operand.vmem [shape: f32[256,64], index: 5, kind: input, shape index: {}]
  %s6 = inlined_call_operand.vmem [shape: f32[1,64], index: 6, kind: input, shape index: {}]
  %s7 = inlined_call_operand.vmem [shape: f32[64,3], index: 7, kind: input, shape index: {}]
  %s8 = inlined_call_operand.vmem [shape: f32[1,3], index: 8, kind: input, shape index: {}]
  %s9 = inlined_call_operand.vmem [shape: f32[8,3], index: 9, kind: output, shape index: {}]
  %s10 = sld [smem:[#allocation0]]
  $region46: #{tpu_custom_call.1} parent=0
    _
  %s12 = ssub.s32 1, %s10
  %s13 = scalar_select 0, %s12, %s10
  // Predicated region
  $region2: #{tpu_custom_call.1} parent=0 // pred_check
    _
  $region3: #{tpu_custom_call.1} parent=0 // pred_check_branch
    %15 = sbr.rel (0) target = $region5
  $region4: #{tpu_custom_call.1} parent=0 // pred_region
    _
  $region5: #{tpu_custom_call.1} parent=0 // pred_fallthru
    _
  // Predicated region
  $region6: #{tpu_custom_call.1} parent=0 // pred_check
    _
  $region7: #{tpu_custom_call.1} parent=0 // pred_check_branch
    %17 = sbr.rel (0) target = $region9
  $region8: #{tpu_custom_call.1} parent=0 // pred_region
    _
  $region9: #{tpu_custom_call.1} parent=0 // pred_fallthru
    _
  // Predicated region
  $region10: #{tpu_custom_call.1} parent=0 // pred_check
    _
  $region11: #{tpu_custom_call.1} parent=0 // pred_check_branch
    %19 = sbr.rel (0) target = $region13
  $region12: #{tpu_custom_call.1} parent=0 // pred_region
    _
  $region13: #{tpu_custom_call.1} parent=0 // pred_fallthru
    _
  // Predicated region
  $region14: #{tpu_custom_call.1} parent=0 // pred_check
    _
  $region15: #{tpu_custom_call.1} parent=0 // pred_check_branch
    %21 = sbr.rel (0) target = $region17
  $region16: #{tpu_custom_call.1} parent=0 // pred_region
    _
  $region17: #{tpu_custom_call.1} parent=0 // pred_fallthru
    _
  // Predicated region
  $region18: #{tpu_custom_call.1} parent=0 // pred_check
    _
  $region19: #{tpu_custom_call.1} parent=0 // pred_check_branch
    %23 = sbr.rel (0) target = $region21
  $region20: #{tpu_custom_call.1} parent=0 // pred_region
    _
  $region21: #{tpu_custom_call.1} parent=0 // pred_fallthru
    _
  // Predicated region
  $region22: #{tpu_custom_call.1} parent=0 // pred_check
    _
  $region23: #{tpu_custom_call.1} parent=0 // pred_check_branch
    %25 = sbr.rel (0) target = $region25
  $region24: #{tpu_custom_call.1} parent=0 // pred_region
    _
  $region25: #{tpu_custom_call.1} parent=0 // pred_fallthru
    _
  // Predicated region
  $region26: #{tpu_custom_call.1} parent=0 // pred_check
    _
  $region27: #{tpu_custom_call.1} parent=0 // pred_check_branch
    %27 = sbr.rel (0) target = $region29
  $region28: #{tpu_custom_call.1} parent=0 // pred_region
    _
  $region29: #{tpu_custom_call.1} parent=0 // pred_fallthru
    _
  // Predicated region
  $region30: #{tpu_custom_call.1} parent=0 // pred_check
    _
  $region31: #{tpu_custom_call.1} parent=0 // pred_check_branch
    %29 = sbr.rel (0) target = $region33
  $region32: #{tpu_custom_call.1} parent=0 // pred_region
    _
  $region33: #{tpu_custom_call.1} parent=0 // pred_fallthru
    _
  // Predicated region
  $region34: #{tpu_custom_call.1} parent=0 // pred_check
    _
  $region35: #{tpu_custom_call.1} parent=0 // pred_check_branch
    %31 = sbr.rel (0) target = $region37
  $region36: #{tpu_custom_call.1} parent=0 // pred_region
    _
  $region37: #{tpu_custom_call.1} parent=0 // pred_fallthru
    _
  %v32 = vld [vmem:[%s0] sm:$0xff]
  %v33 = vld [vmem:[%s1] sm:$0x7]
  %35 = vset.pattern.permute.xlu0 0
  %36 = vperm.xlu0 %35, %v32
  %v37 = vpop.permute.xlu0 %36
  %v39 = vlaneseq
  %v40 = vshrl.u32 %v39, 7
  %v41 = vsub.s32 0, %v40
  %v42 = vrot.slane %v33, %v41
  %v43 = vmul.f32 %v37, %v42
  %44 = vset.pattern.permute.xlu0 1
  %45 = vperm.xlu0 %44, %v32
  %v46 = vpop.permute.xlu0 %45
  %v48 = vlaneseq
  %v49 = vshrl.u32 %v48, 7
  %v50 = vsub.s32 1, %v49
  %v51 = vrot.slane %v33, %v50
  %v52 = vmul.f32 %v46, %v51
  %v53 = vadd.f32 %v43, %v52
  %54 = vset.pattern.permute.xlu0 2
  %55 = vperm.xlu0 %54, %v32
  %v56 = vpop.permute.xlu0 %55
  %v58 = vlaneseq
  %v59 = vshrl.u32 %v58, 7
  %v60 = vsub.s32 2, %v59
  %v61 = vrot.slane %v33, %v60
  %v62 = vmul.f32 %v56, %v61
  %v63 = vadd.f32 %v53, %v62
  %v64 = vld [vmem:[%s2] sm:$0x1]
  %v66 = vlaneseq
  %v67 = vshrl.u32 %v66, 7
  %v68 = vsub.s32 0, %v67
  %v69 = vrot.slane %v64, %v68
  %v71 = vadd.f32 %v63, %v69
  %v72 = vtanh.pop %v71
  %v73 = vld [vmem:[%s3] sm:$0xff]
  %v74 = vld [vmem:[%s3 + $0x8] sm:$0xff]
  %v75 = vld [vmem:[%s3 + $0x10] sm:$0xff]
  %v76 = vld [vmem:[%s3 + $0x18] sm:$0xff]
  %v77 = vld [vmem:[%s3 + $0x20] sm:$0xff]
  %v78 = vld [vmem:[%s3 + $0x28] sm:$0xff]
  %v79 = vld [vmem:[%s3 + $0x30] sm:$0xff]
  %v80 = vld [vmem:[%s3 + $0x38] sm:$0xff]
  %v81 = vld [vmem:[%s3 + $0x40] sm:$0xff]
  %v82 = vld [vmem:[%s3 + $0x48] sm:$0xff]
  %v83 = vld [vmem:[%s3 + $0x50] sm:$0xff]
  %v84 = vld [vmem:[%s3 + $0x58] sm:$0xff]
  %v85 = vld [vmem:[%s3 + $0x60] sm:$0xff]
  %v86 = vld [vmem:[%s3 + $0x68] sm:$0xff]
  %v87 = vld [vmem:[%s3 + $0x70] sm:$0xff]
  %v88 = vld [vmem:[%s3 + $0x78] sm:$0xff]
  %v89 = vld [vmem:[%s4] sm:$0x3]
  %v91 = vlaneseq
  %v92 = vshrl.u32 %v91, 7
  %v93 = vsub.s32 0, %v92
  %v94 = vrot.slane %v89, %v93
  %v95 = vlaneseq
  %v96 = vshrl.u32 %v95, 7
  %v97 = vsub.s32 1, %v96
  %v98 = vrot.slane %v89, %v97
  %vm101 = vcmask 523264
  %v103 = vsel %vm101, %v72, 0
  %105 = vmatprep.subr.mxu0 %v74
  %106 = vmatpush1.msra.mxu0 %v73
  %107 = vmatprep.subr.mxu0 %v76
  %108 = vmatpush1.msra.mxu0 %v75
  %109 = vmatprep.subr.mxu0 %v78
  %110 = vmatpush1.msra.mxu0 %v77
  %111 = vmatprep.subr.mxu0 %v80
  %112 = vmatpush1.msra.mxu0 %v79
  %113 = vmatprep.subr.mxu0 %v82
  %114 = vmatpush1.msra.mxu0 %v81
  %115 = vmatprep.subr.mxu0 %v84
  %116 = vmatpush1.msra.mxu0 %v83
  %117 = vmatprep.subr.mxu0 %v86
  %118 = vmatpush1.msra.mxu0 %v85
  %119 = vmatprep.subr.mxu0 %v88
  %120 = vmatpush1.msra.mxu0 %v87
  %121 = vmatprep.subr.mxu0 0.0
  %122 = vmatpush1.msra.mxu0 0.0
  %123 = vmatprep.subr.mxu0 0.0
  %124 = vmatpush1.msra.mxu0 0.0
  %125 = vmatprep.subr.mxu0 0.0
  %126 = vmatpush1.msra.mxu0 0.0
  %127 = vmatprep.subr.mxu0 0.0
  %128 = vmatpush1.msra.mxu0 0.0
  %129 = vmatprep.subr.mxu0 0.0
  %130 = vmatpush1.msra.mxu0 0.0
  %131 = vmatprep.subr.mxu0 0.0
  %132 = vmatpush1.msra.mxu0 0.0
  %133 = vmatprep.subr.mxu0 0.0
  %134 = vmatpush1.msra.mxu0 0.0
  %135 = vmatprep.subr.mxu0 0.0
  %136 = vmatpush1.msra.mxu0 0.0
  %137 = vmatprep.subr.mxu0 0.0
  %138 = vmatpush1.msra.mxu0 0.0
  %139 = vmatprep.subr.mxu0 0.0
  %140 = vmatpush1.msra.mxu0 0.0
  %141 = vmatprep.subr.mxu0 0.0
  %142 = vmatpush1.msra.mxu0 0.0
  %143 = vmatprep.subr.mxu0 0.0
  %144 = vmatpush1.msra.mxu0 0.0
  %145 = vmatprep.subr.mxu0 0.0
  %146 = vmatpush1.msra.mxu0 0.0
  %147 = vmatprep.subr.mxu0 0.0
  %148 = vmatpush1.msra.mxu0 0.0
  %149 = vmatprep.subr.mxu0 0.0
  %150 = vmatpush1.msra.mxu0 0.0
  %151 = vmatprep.subr.mxu0 0.0
  %152 = vmatpush1.msra.mxu0 0.0
  %153 = vmatprep.subr.mxu0 0.0
  %154 = vmatpush1.msra.mxu0 0.0
  %155 = vmatprep.subr.mxu0 0.0
  %156 = vmatpush1.msra.mxu0 0.0
  %157 = vmatprep.subr.mxu0 0.0
  %158 = vmatpush1.msra.mxu0 0.0
  %159 = vmatprep.subr.mxu0 0.0
  %160 = vmatpush1.msra.mxu0 0.0
  %161 = vmatprep.subr.mxu0 0.0
  %162 = vmatpush1.msra.mxu0 0.0
  %163 = vmatprep.subr.mxu0 0.0
  %164 = vmatpush1.msra.mxu0 0.0
  %165 = vmatprep.subr.mxu0 0.0
  %166 = vmatpush1.msra.mxu0 0.0
  %167 = vmatprep.subr.mxu0 0.0
  %168 = vmatpush1.msra.mxu0 0.0
  %169 = vmatprep.mubr.f32.mxu0 0.0
  %170 = vmatmul.mubr.f32.gmra.mrb[0].mxu0 %v103
  %v171 = vpop.f32.mrb[0].mxu0
  %v172 = vadd.f32 %v94, %v171
  %v173 = vpop.f32.mrb[0].mxu0
  %v174 = vadd.f32 %v98, %v173
  %175 = vdwg.mxu0
  %v176 = vtanh.pop %v172
  %v177 = vtanh.pop %v174
  %v178 = vld [vmem:[%s5] sm:$0xff]
  %v179 = vld [vmem:[%s5 + $0x8] sm:$0xff]
  %v180 = vld [vmem:[%s5 + $0x10] sm:$0xff]
  %v181 = vld [vmem:[%s5 + $0x18] sm:$0xff]
  %v182 = vld [vmem:[%s5 + $0x20] sm:$0xff]
  %v183 = vld [vmem:[%s5 + $0x28] sm:$0xff]
  %v184 = vld [vmem:[%s5 + $0x30] sm:$0xff]
  %v185 = vld [vmem:[%s5 + $0x38] sm:$0xff]
  %v186 = vld [vmem:[%s5 + $0x40] sm:$0xff]
  %v187 = vld [vmem:[%s5 + $0x48] sm:$0xff]
  %v188 = vld [vmem:[%s5 + $0x50] sm:$0xff]
  %v189 = vld [vmem:[%s5 + $0x58] sm:$0xff]
  %v190 = vld [vmem:[%s5 + $0x60] sm:$0xff]
  %v191 = vld [vmem:[%s5 + $0x68] sm:$0xff]
  %v192 = vld [vmem:[%s5 + $0x70] sm:$0xff]
  %v193 = vld [vmem:[%s5 + $0x78] sm:$0xff]
  %v194 = vld [vmem:[%s5 + $0x80] sm:$0xff]
  %v195 = vld [vmem:[%s5 + $0x88] sm:$0xff]
  %v196 = vld [vmem:[%s5 + $0x90] sm:$0xff]
  %v197 = vld [vmem:[%s5 + $0x98] sm:$0xff]
  %v198 = vld [vmem:[%s5 + $0xa0] sm:$0xff]
  %v199 = vld [vmem:[%s5 + $0xa8] sm:$0xff]
  %v200 = vld [vmem:[%s5 + $0xb0] sm:$0xff]
  %v201 = vld [vmem:[%s5 + $0xb8] sm:$0xff]
  %v202 = vld [vmem:[%s5 + $0xc0] sm:$0xff]
  %v203 = vld [vmem:[%s5 + $0xc8] sm:$0xff]
  %v204 = vld [vmem:[%s5 + $0xd0] sm:$0xff]
  %v205 = vld [vmem:[%s5 + $0xd8] sm:$0xff]
  %v206 = vld [vmem:[%s5 + $0xe0] sm:$0xff]
  %v207 = vld [vmem:[%s5 + $0xe8] sm:$0xff]
  %v208 = vld [vmem:[%s5 + $0xf0] sm:$0xff]
  %v209 = vld [vmem:[%s5 + $0xf8] sm:$0xff]
  %v210 = vld [vmem:[%s6] sm:$0x1]
  %v212 = vlaneseq
  %v213 = vshrl.u32 %v212, 7
  %v214 = vsub.s32 0, %v213
  %v215 = vrot.slane %v210, %v214
  %217 = vmatprep.subr.mxu0 0.0
  %218 = vmatpush1.msra.mxu0 %v178
  %219 = vmatprep.subr.mxu0 0.0
  %220 = vmatpush1.msra.mxu0 %v179
  %221 = vmatprep.subr.mxu0 0.0
  %222 = vmatpush1.msra.mxu0 %v180
  %223 = vmatprep.subr.mxu0 0.0
  %224 = vmatpush1.msra.mxu0 %v181
  %225 = vmatprep.subr.mxu0 0.0
  %226 = vmatpush1.msra.mxu0 %v182
  %227 = vmatprep.subr.mxu0 0.0
  %228 = vmatpush1.msra.mxu0 %v183
  %229 = vmatprep.subr.mxu0 0.0
  %230 = vmatpush1.msra.mxu0 %v184
  %231 = vmatprep.subr.mxu0 0.0
  %232 = vmatpush1.msra.mxu0 %v185
  %233 = vmatprep.subr.mxu0 0.0
  %234 = vmatpush1.msra.mxu0 %v186
  %235 = vmatprep.subr.mxu0 0.0
  %236 = vmatpush1.msra.mxu0 %v187
  %237 = vmatprep.subr.mxu0 0.0
  %238 = vmatpush1.msra.mxu0 %v188
  %239 = vmatprep.subr.mxu0 0.0
  %240 = vmatpush1.msra.mxu0 %v189
  %241 = vmatprep.subr.mxu0 0.0
  %242 = vmatpush1.msra.mxu0 %v190
  %243 = vmatprep.subr.mxu0 0.0
  %244 = vmatpush1.msra.mxu0 %v191
  %245 = vmatprep.subr.mxu0 0.0
  %246 = vmatpush1.msra.mxu0 %v192
  %247 = vmatprep.subr.mxu0 0.0
  %248 = vmatpush1.msra.mxu0 %v193
  %249 = vmatprep.subr.mxu0 0.0
  %250 = vmatpush1.msra.mxu0 %v194
  %251 = vmatprep.subr.mxu0 0.0
  %252 = vmatpush1.msra.mxu0 %v195
  %253 = vmatprep.subr.mxu0 0.0
  %254 = vmatpush1.msra.mxu0 %v196
  %255 = vmatprep.subr.mxu0 0.0
  %256 = vmatpush1.msra.mxu0 %v197
  %257 = vmatprep.subr.mxu0 0.0
  %258 = vmatpush1.msra.mxu0 %v198
  %259 = vmatprep.subr.mxu0 0.0
  %260 = vmatpush1.msra.mxu0 %v199
  %261 = vmatprep.subr.mxu0 0.0
  %262 = vmatpush1.msra.mxu0 %v200
  %263 = vmatprep.subr.mxu0 0.0
  %264 = vmatpush1.msra.mxu0 %v201
  %265 = vmatprep.subr.mxu0 0.0
  %266 = vmatpush1.msra.mxu0 %v202
  %267 = vmatprep.subr.mxu0 0.0
  %268 = vmatpush1.msra.mxu0 %v203
  %269 = vmatprep.subr.mxu0 0.0
  %270 = vmatpush1.msra.mxu0 %v204
  %271 = vmatprep.subr.mxu0 0.0
  %272 = vmatpush1.msra.mxu0 %v205
  %273 = vmatprep.subr.mxu0 0.0
  %274 = vmatpush1.msra.mxu0 %v206
  %275 = vmatprep.subr.mxu0 0.0
  %276 = vmatpush1.msra.mxu0 %v207
  %277 = vmatprep.subr.mxu0 0.0
  %278 = vmatpush1.msra.mxu0 %v208
  %279 = vmatprep.subr.mxu0 0.0
  %280 = vmatpush1.msra.mxu0 %v209
  %281 = vmatprep.mubr.f32.mxu0 %v177
  %282 = vmatmul.mubr.f32.gmra.mrb[0].mxu0 %v176
  %v283 = vpop.f32.mrb[0].mxu0
  %v284 = vadd.f32 %v215, %v283
  %v285 = vpop.f32.mrb[0].mxu0
  %286 = vdwg.mxu0
  %v287 = vtanh.pop %v284
  %v288 = vld [vmem:[%s7] sm:$0xff]
  %v289 = vld [vmem:[%s7 + $0x8] sm:$0xff]
  %v290 = vld [vmem:[%s7 + $0x10] sm:$0xff]
  %v291 = vld [vmem:[%s7 + $0x18] sm:$0xff]
  %v292 = vld [vmem:[%s7 + $0x20] sm:$0xff]
  %v293 = vld [vmem:[%s7 + $0x28] sm:$0xff]
  %v294 = vld [vmem:[%s7 + $0x30] sm:$0xff]
  %v295 = vld [vmem:[%s7 + $0x38] sm:$0xff]
  %v296 = vld [vmem:[%s8] sm:$0x1]
  %v298 = vlaneseq
  %v299 = vshrl.u32 %v298, 7
  %v300 = vsub.s32 0, %v299
  %v301 = vrot.slane %v296, %v300
  %v304 = vsel %vm101, %v287, 0
  %306 = vmatprep.subr.mxu0 0.0
  %307 = vmatpush1.msra.mxu0 %v288
  %308 = vmatprep.subr.mxu0 0.0
  %309 = vmatpush1.msra.mxu0 %v289
  %310 = vmatprep.subr.mxu0 0.0
  %311 = vmatpush1.msra.mxu0 %v290
  %312 = vmatprep.subr.mxu0 0.0
  %313 = vmatpush1.msra.mxu0 %v291
  %314 = vmatprep.subr.mxu0 0.0
  %315 = vmatpush1.msra.mxu0 %v292
  %316 = vmatprep.subr.mxu0 0.0
  %317 = vmatpush1.msra.mxu0 %v293
  %318 = vmatprep.subr.mxu0 0.0
  %319 = vmatpush1.msra.mxu0 %v294
  %320 = vmatprep.subr.mxu0 0.0
  %321 = vmatpush1.msra.mxu0 %v295
  %322 = vmatprep.subr.mxu0 0.0
  %323 = vmatpush1.msra.mxu0 0.0
  %324 = vmatprep.subr.mxu0 0.0
  %325 = vmatpush1.msra.mxu0 0.0
  %326 = vmatprep.subr.mxu0 0.0
  %327 = vmatpush1.msra.mxu0 0.0
  %328 = vmatprep.subr.mxu0 0.0
  %329 = vmatpush1.msra.mxu0 0.0
  %330 = vmatprep.subr.mxu0 0.0
  %331 = vmatpush1.msra.mxu0 0.0
  %332 = vmatprep.subr.mxu0 0.0
  %333 = vmatpush1.msra.mxu0 0.0
  %334 = vmatprep.subr.mxu0 0.0
  %335 = vmatpush1.msra.mxu0 0.0
  %336 = vmatprep.subr.mxu0 0.0
  %337 = vmatpush1.msra.mxu0 0.0
  %338 = vmatprep.subr.mxu0 0.0
  %339 = vmatpush1.msra.mxu0 0.0
  %340 = vmatprep.subr.mxu0 0.0
  %341 = vmatpush1.msra.mxu0 0.0
  %342 = vmatprep.subr.mxu0 0.0
  %343 = vmatpush1.msra.mxu0 0.0
  %344 = vmatprep.subr.mxu0 0.0
  %345 = vmatpush1.msra.mxu0 0.0
  %346 = vmatprep.subr.mxu0 0.0
  %347 = vmatpush1.msra.mxu0 0.0
  %348 = vmatprep.subr.mxu0 0.0
  %349 = vmatpush1.msra.mxu0 0.0
  %350 = vmatprep.subr.mxu0 0.0
  %351 = vmatpush1.msra.mxu0 0.0
  %352 = vmatprep.subr.mxu0 0.0
  %353 = vmatpush1.msra.mxu0 0.0
  %354 = vmatprep.subr.mxu0 0.0
  %355 = vmatpush1.msra.mxu0 0.0
  %356 = vmatprep.subr.mxu0 0.0
  %357 = vmatpush1.msra.mxu0 0.0
  %358 = vmatprep.subr.mxu0 0.0
  %359 = vmatpush1.msra.mxu0 0.0
  %360 = vmatprep.subr.mxu0 0.0
  %361 = vmatpush1.msra.mxu0 0.0
  %362 = vmatprep.subr.mxu0 0.0
  %363 = vmatpush1.msra.mxu0 0.0
  %364 = vmatprep.subr.mxu0 0.0
  %365 = vmatpush1.msra.mxu0 0.0
  %366 = vmatprep.subr.mxu0 0.0
  %367 = vmatpush1.msra.mxu0 0.0
  %368 = vmatprep.subr.mxu0 0.0
  %369 = vmatpush1.msra.mxu0 0.0
  %370 = vmatprep.mubr.f32.mxu0 0.0
  %371 = vmatmul.mubr.f32.gmra.mrb[0].mxu0 %v304
  %v372 = vpop.f32.mrb[0].mxu0
  %v373 = vadd.f32 %v301, %v372
  %v374 = vpop.f32.mrb[0].mxu0
  %375 = vdwg.mxu0
  %vm376 = vcmask 23552
  %377 = vst.msk [vmem:[%s9] sm:$0xff] %vm376, %v373
  // Predicated region
  $region38: #{tpu_custom_call.1} parent=0 // pred_check
    _
  $region39: #{tpu_custom_call.1} parent=0 // pred_check_branch
    %379 = sbr.rel (0) target = $region41
  $region40: #{tpu_custom_call.1} parent=0 // pred_region
    _
  $region41: #{tpu_custom_call.1} parent=0 // pred_fallthru
    _
  // Predicated region
  $region42: #{tpu_custom_call.1} parent=0 // pred_check
    _
  $region43: #{tpu_custom_call.1} parent=0 // pred_check_branch
    %381 = sbr.rel (0) target = $region45
  $region44: #{tpu_custom_call.1} parent=0 // pred_region
    _
  $region45: #{tpu_custom_call.1} parent=0 // pred_fallthru
    _

</llo_original>
